<compile_context>
chip_gen: v5e
topology: v5e:2x2
jax: 0.10.0
libtpu: 0.0.40
codegen_flags: <defaults>
</compile_context>

<pallas_src>
import functools

import jax
import jax.numpy as jnp
from jax.experimental import pallas as pl
from jax.experimental.pallas import tpu as pltpu

LANE = 128          # lane width: feature dims padded to a multiple of this
SUBLANE_BF16 = 16   # bf16 sublane packing: node dim padded to a multiple of this


def _round_up(x, m):
    return (x + m - 1) // m * m


# ----------------------------- Pallas kernel --------------------------------
def _graphsage_fused_kernel(a_ref, h_ref, w_ref, b_ref, o_ref, *, num_layers):
    """Whole GraphSAGE forward on a single VMEM-resident block.

    a_ref : [N_pad, N_pad]           bf16  row-normalized adjacency (self-loops incl.)
    h_ref : [N_pad, F_pad]           bf16  padded input node features
    w_ref : [L, 2*F_pad, F_pad]      bf16  per-layer stacked [W_self ; W_neigh]
    b_ref : [L, 1, F_pad]            f32   per-layer padded bias
    o_ref : [N_pad, F_pad]           f32   padded output node features (last layer)
    """
    a = a_ref[...]
    h = h_ref[...]
    for l in range(num_layers):  # static unroll over layers; H stays on-chip
        # mean aggregation over in-neighbors (MXU, f32 accumulate)
        h_neigh = jnp.dot(a, h, preferred_element_type=jnp.float32)
        # merged weight matmul: [H | H_neigh] @ [W_self ; W_neigh] + bias
        hh = jnp.concatenate([h, h_neigh.astype(jnp.bfloat16)], axis=-1)
        out = jnp.dot(hh, w_ref[l], preferred_element_type=jnp.float32) + b_ref[l]
        if l < num_layers - 1:
            h = jnp.maximum(out, 0.0).astype(jnp.bfloat16)   # hidden layer: ReLU
        else:
            o_ref[...] = out.astype(o_ref.dtype)             # last layer: no activation


# ----------------------------- Wrapper ---------------------------------------
def _prepare_inputs(a_norm, feats, params):
    """Pad to lane-dense shapes, stack per-layer weights, cast MXU inputs to bf16."""
    n = a_norm.shape[0]
    dims = [feats.shape[1]] + [p["w_self"].shape[1] for p in params]
    f_pad = _round_up(max(dims), LANE)
    n_pad = _round_up(n, SUBLANE_BF16)

    a_pad = (
        jnp.zeros((n_pad, n_pad), jnp.float32).at[:n, :n].set(a_norm)
    ).astype(jnp.bfloat16)
    h0 = (
        jnp.zeros((n_pad, f_pad), jnp.float32).at[:n, : feats.shape[1]].set(feats)
    ).astype(jnp.bfloat16)

    w_list, b_list = [], []
    for p in params:
        f_in, f_out = p["w_self"].shape
        w = jnp.zeros((2 * f_pad, f_pad), jnp.float32)
        w = w.at[:f_in, :f_out].set(p["w_self"])
        w = w.at[f_pad : f_pad + f_in, :f_out].set(p["w_neigh"])
        w_list.append(w)
        b_list.append(jnp.zeros((1, f_pad), jnp.float32).at[:, :f_out].set(p["bias"]))
    w_stacked = jnp.stack(w_list).astype(jnp.bfloat16)   # [L, 2*F_pad, F_pad]
    b_stacked = jnp.stack(b_list)                        # [L, 1, F_pad] (f32)
    return a_pad, h0, w_stacked, b_stacked, n_pad, f_pad


def graphsage_forward(a_norm, feats, params):
    """Full GraphSAGE forward as one fused Pallas kernel call."""
    n = a_norm.shape[0]
    f_out_final = params[-1]["w_self"].shape[1]
    num_layers = len(params)
    a_pad, h0, w_stk, b_stk, n_pad, f_pad = _prepare_inputs(a_norm, feats, params)

    kernel = functools.partial(_graphsage_fused_kernel, num_layers=num_layers)
    out_pad = pl.pallas_call(
        kernel,
        out_shape=jax.ShapeDtypeStruct((n_pad, f_pad), jnp.float32),
        in_specs=[
            pl.BlockSpec((n_pad, n_pad), lambda: (0, 0)),
            pl.BlockSpec((n_pad, f_pad), lambda: (0, 0)),
            pl.BlockSpec((num_layers, 2 * f_pad, f_pad), lambda: (0, 0, 0)),
            pl.BlockSpec((num_layers, 1, f_pad), lambda: (0, 0, 0)),
        ],
        out_specs=pl.BlockSpec((n_pad, f_pad), lambda: (0, 0)),
        compiler_params=pltpu.CompilerParams(vmem_limit_bytes=32 * 1024 * 1024),
    )(a_pad, h0, w_stk, b_stk)
    return out_pad[:n, :f_out_final]


# ----------------------------- Parameter init --------------------------------
def init_graphsage_params(key, in_features, h_features, out_features):
    dims = [in_features] + list(h_features) + [out_features]
    params = []
    for i in range(len(dims) - 1):
        f_in, f_out = dims[i], dims[i + 1]
        key, k1, k2, k3 = jax.random.split(key, 4)
        scale = 1.0 / jnp.sqrt(jnp.float32(f_in))
        params.append(
            dict(
                w_self=jax.random.normal(k1, (f_in, f_out), jnp.float32) * scale,
                w_neigh=jax.random.normal(k2, (f_in, f_out), jnp.float32) * scale,
                bias=jax.random.normal(k3, (1, f_out), jnp.float32) * 0.01,
            )
        )
    return params


# ----------------------------- References ------------------------------------
def _reference_forward_bf16(a_norm, feats, params):
    """Plain-JAX reference that mirrors the kernel's bf16-input / f32-accumulate math."""
    a_pad, h, w_stk, b_stk, _, _ = _prepare_inputs(a_norm, feats, params)
    num_layers = len(params)
    out = None
    for l in range(num_layers):
        h_neigh = jnp.dot(a_pad, h, preferred_element_type=jnp.float32)
        hh = jnp.concatenate([h, h_neigh.astype(jnp.bfloat16)], axis=-1)
        out = jnp.dot(hh, w_stk[l], preferred_element_type=jnp.float32) + b_stk[l]
        if l < num_layers - 1:
            h = jnp.maximum(out, 0.0).astype(jnp.bfloat16)
    n = a_norm.shape[0]
    return out[:n, : params[-1]["w_self"].shape[1]]


def _reference_forward_f32(a_norm, feats, params):
    """Exact module semantics in f32 (loose-tolerance sanity check for bf16 inputs)."""
    h = feats
    n_layers = len(params)
    for i, p in enumerate(params):
        h_neigh = a_norm @ h
        out = h @ p["w_self"] + h_neigh @ p["w_neigh"] + p["bias"]
        if i < n_layers - 1:
            out = jnp.maximum(out, 0.0)
        h = out
    return h


# --------------------------------- Main --------------------------------------
if __name__ == "__main__":
    key = jax.random.PRNGKey(0)

    # Small synthetic graph: N nodes, random directed edges + self loops.
    N = 16
    in_features = 8
    h_features = [32, 32]
    out_features = 8

    key, k_adj, k_feat, k_par = jax.random.split(key, 4)
    adj = (jax.random.uniform(k_adj, (N, N)) < 0.25).astype(jnp.float32)
    adj = jnp.maximum(adj, jnp.eye(N, dtype=jnp.float32))  # add self loops
    in_deg = jnp.sum(adj, axis=1, keepdims=True)           # in-degree per dst node
    a_norm = adj / in_deg                                  # mean-aggregation matrix

    feats = jax.random.normal(k_feat, (N, in_features), jnp.float32)
    params = init_graphsage_params(k_par, in_features, h_features, out_features)

    out = graphsage_forward(a_norm, feats, params)
    out = jax.block_until_ready(out)
    assert out.shape == (N, out_features)

    # Tight check against a reference using the same bf16 MXU inputs / f32 accumulation.
    ref_bf16 = _reference_forward_bf16(a_norm, feats, params)
    assert jnp.allclose(out, ref_bf16, atol=1e-3, rtol=1e-3)

    # Loose check against the exact f32 module semantics (bf16 input rounding).
    ref_f32 = _reference_forward_f32(a_norm, feats, params)
    assert jnp.allclose(out, ref_f32, atol=5e-2, rtol=5e-2)

    print("KERNEL_OK")
</pallas_src>

<mosaic_0001>
module attributes {stable_mosaic.version = 11 : i64} {
  func.func @_graphsage_fused_kernel(%arg0: memref<16x16xbf16, #tpu.memory_space<vmem>>, %arg1: memref<16x128xbf16, #tpu.memory_space<vmem>>, %arg2: memref<3x256x128xbf16, #tpu.memory_space<vmem>>, %arg3: memref<3x1x128xf32, #tpu.memory_space<vmem>>, %arg4: memref<16x128xf32, #tpu.memory_space<vmem>>) attributes {dimension_semantics = [], scalar_prefetch = 0 : i64, scratch_operands = 0 : i64, tpu.core_type = #tpu.core_type<tc>} {
    %c0 = arith.constant 0 : index
    %c0_0 = arith.constant 0 : index
    %0 = vector.load %arg0[%c0, %c0_0] : memref<16x16xbf16, #tpu.memory_space<vmem>>, vector<16x16xbf16>
    %c0_1 = arith.constant 0 : index
    %c0_2 = arith.constant 0 : index
    %1 = vector.load %arg1[%c0_1, %c0_2] : memref<16x128xbf16, #tpu.memory_space<vmem>>, vector<16x128xbf16>
    %cst = arith.constant dense<0.000000e+00> : vector<16x128xf32>
    %2 = tpu.matmul %0, %1, %cst {dimension_numbers = #tpu.dot_dimension_numbers<[1], [0], [0], [1], [0, 0, 1, 1], [], []>} : vector<16x16xbf16>, vector<16x128xbf16>, vector<16x128xf32> -> vector<16x128xf32>
    %3 = arith.truncf %2 : vector<16x128xf32> to vector<16x128xbf16>
    %4 = tpu.concatenate %1, %3 in 1 : vector<16x128xbf16>, vector<16x128xbf16> -> vector<16x256xbf16>
    %c0_3 = arith.constant 0 : index
    %c0_4 = arith.constant 0 : index
    %c0_5 = arith.constant 0 : index
    %5 = vector.load %arg2[%c0_3, %c0_4, %c0_5] : memref<3x256x128xbf16, #tpu.memory_space<vmem>>, vector<1x256x128xbf16>
    %6 = vector.shape_cast %5 : vector<1x256x128xbf16> to vector<256x128xbf16>
    %cst_6 = arith.constant dense<0.000000e+00> : vector<16x128xf32>
    %7 = tpu.matmul %4, %6, %cst_6 {dimension_numbers = #tpu.dot_dimension_numbers<[1], [0], [0], [1], [0, 0, 1, 1], [], []>} : vector<16x256xbf16>, vector<256x128xbf16>, vector<16x128xf32> -> vector<16x128xf32>
    %c0_7 = arith.constant 0 : index
    %c0_8 = arith.constant 0 : index
    %c0_9 = arith.constant 0 : index
    %8 = vector.load %arg3[%c0_7, %c0_8, %c0_9] : memref<3x1x128xf32, #tpu.memory_space<vmem>>, vector<1x1x128xf32>
    %9 = vector.shape_cast %8 : vector<1x1x128xf32> to vector<1x128xf32>
    %10 = vector.broadcast %9 : vector<1x128xf32> to vector<16x128xf32>
    %11 = arith.addf %7, %10 : vector<16x128xf32>
    %cst_10 = arith.constant 0.000000e+00 : f32
    %12 = vector.broadcast %cst_10 : f32 to vector<16x128xf32>
    %13 = arith.maximumf %11, %12 : vector<16x128xf32>
    %14 = arith.truncf %13 : vector<16x128xf32> to vector<16x128xbf16>
    %cst_11 = arith.constant dense<0.000000e+00> : vector<16x128xf32>
    %15 = tpu.matmul %0, %14, %cst_11 {dimension_numbers = #tpu.dot_dimension_numbers<[1], [0], [0], [1], [0, 0, 1, 1], [], []>} : vector<16x16xbf16>, vector<16x128xbf16>, vector<16x128xf32> -> vector<16x128xf32>
    %16 = arith.truncf %15 : vector<16x128xf32> to vector<16x128xbf16>
    %17 = tpu.concatenate %14, %16 in 1 : vector<16x128xbf16>, vector<16x128xbf16> -> vector<16x256xbf16>
    %c1 = arith.constant 1 : index
    %c0_12 = arith.constant 0 : index
    %c0_13 = arith.constant 0 : index
    %18 = vector.load %arg2[%c1, %c0_12, %c0_13] : memref<3x256x128xbf16, #tpu.memory_space<vmem>>, vector<1x256x128xbf16>
    %19 = vector.shape_cast %18 : vector<1x256x128xbf16> to vector<256x128xbf16>
    %cst_14 = arith.constant dense<0.000000e+00> : vector<16x128xf32>
    %20 = tpu.matmul %17, %19, %cst_14 {dimension_numbers = #tpu.dot_dimension_numbers<[1], [0], [0], [1], [0, 0, 1, 1], [], []>} : vector<16x256xbf16>, vector<256x128xbf16>, vector<16x128xf32> -> vector<16x128xf32>
    %c1_15 = arith.constant 1 : index
    %c0_16 = arith.constant 0 : index
    %c0_17 = arith.constant 0 : index
    %21 = vector.load %arg3[%c1_15, %c0_16, %c0_17] : memref<3x1x128xf32, #tpu.memory_space<vmem>>, vector<1x1x128xf32>
    %22 = vector.shape_cast %21 : vector<1x1x128xf32> to vector<1x128xf32>
    %23 = vector.broadcast %22 : vector<1x128xf32> to vector<16x128xf32>
    %24 = arith.addf %20, %23 : vector<16x128xf32>
    %cst_18 = arith.constant 0.000000e+00 : f32
    %25 = vector.broadcast %cst_18 : f32 to vector<16x128xf32>
    %26 = arith.maximumf %24, %25 : vector<16x128xf32>
    %27 = arith.truncf %26 : vector<16x128xf32> to vector<16x128xbf16>
    %cst_19 = arith.constant dense<0.000000e+00> : vector<16x128xf32>
    %28 = tpu.matmul %0, %27, %cst_19 {dimension_numbers = #tpu.dot_dimension_numbers<[1], [0], [0], [1], [0, 0, 1, 1], [], []>} : vector<16x16xbf16>, vector<16x128xbf16>, vector<16x128xf32> -> vector<16x128xf32>
    %29 = arith.truncf %28 : vector<16x128xf32> to vector<16x128xbf16>
    %30 = tpu.concatenate %27, %29 in 1 : vector<16x128xbf16>, vector<16x128xbf16> -> vector<16x256xbf16>
    %c2 = arith.constant 2 : index
    %c0_20 = arith.constant 0 : index
    %c0_21 = arith.constant 0 : index
    %31 = vector.load %arg2[%c2, %c0_20, %c0_21] : memref<3x256x128xbf16, #tpu.memory_space<vmem>>, vector<1x256x128xbf16>
    %32 = vector.shape_cast %31 : vector<1x256x128xbf16> to vector<256x128xbf16>
    %cst_22 = arith.constant dense<0.000000e+00> : vector<16x128xf32>
    %33 = tpu.matmul %30, %32, %cst_22 {dimension_numbers = #tpu.dot_dimension_numbers<[1], [0], [0], [1], [0, 0, 1, 1], [], []>} : vector<16x256xbf16>, vector<256x128xbf16>, vector<16x128xf32> -> vector<16x128xf32>
    %c2_23 = arith.constant 2 : index
    %c0_24 = arith.constant 0 : index
    %c0_25 = arith.constant 0 : index
    %34 = vector.load %arg3[%c2_23, %c0_24, %c0_25] : memref<3x1x128xf32, #tpu.memory_space<vmem>>, vector<1x1x128xf32>
    %35 = vector.shape_cast %34 : vector<1x1x128xf32> to vector<1x128xf32>
    %36 = vector.broadcast %35 : vector<1x128xf32> to vector<16x128xf32>
    %37 = arith.addf %33, %36 : vector<16x128xf32>
    %c0_26 = arith.constant 0 : index
    %c0_27 = arith.constant 0 : index
    %38 = vector.load %arg4[%c0_26, %c0_27] : memref<16x128xf32, #tpu.memory_space<vmem>>, vector<16x128xf32>
    tpu.vector_store %arg4[%c0_26, %c0_27], %37 {strides = array<i32>} : memref<16x128xf32, #tpu.memory_space<vmem>>, vector<16x128xf32>,
    return
  }
}

</mosaic_0001>

<llo_original>
// kernel: tpu_custom_call.1
$region0: #{tpu_custom_call.1}
  #allocation0 [shape = 'u32[]', space=smem, size = 0x4, offset = 0x4, fixed_abs, tag = 'smem constant byte address 0x4 - core index']
  #allocation1 [shape = 'u32[72,128]{1,0:T(1,128)}', space=vmem, size = 0x9000, scoped, tag = 'internal scratch']
  %s0 = inlined_call_operand.hbm [shape: bf16[16,16], index: 0, kind: input, shape index: {}]
  %s1 = inlined_call_operand.hbm [shape: bf16[16,128], index: 1, kind: input, shape index: {}]
  %s2 = inlined_call_operand.hbm [shape: bf16[3,256,128], index: 2, kind: input, shape index: {}]
  %s3 = inlined_call_operand.hbm [shape: f32[3,1,128], index: 3, kind: input, shape index: {}]
  %s4 = inlined_call_operand.hbm [shape: f32[16,128], index: 4, kind: output, shape index: {}]
  %s5 = sld [smem:[#allocation0]]
  $region42: #{tpu_custom_call.1} parent=0
    _
  %s7 = ssub.s32 1, %s5
  %s8 = scalar_select 0, %s7, %s5
  $region1: #{tpu_custom_call.1} parent=0
    #allocation2 [shape = 'u8[4096]{0}', space=vmem, size = 0x1000, scoped, tag = 'input window, operand 0, single buffered']
    #allocation3 [shape = 's32[1]{0}', space=sflag, size = 0x4, scoped, tag = 'scoped memory for tpu_custom_call.1']
    #allocation4 [shape = 's32[1]{0}', space=sflag, size = 0x4, scoped, tag = 'scoped memory for tpu_custom_call.1']
    #allocation5 [shape = 'u8[4096]{0}', space=vmem, size = 0x1000, scoped, tag = 'input window, operand 1, single buffered']
    #allocation6 [shape = 's32[1]{0}', space=sflag, size = 0x4, scoped, tag = 'scoped memory for tpu_custom_call.1']
    #allocation7 [shape = 'u8[196608]{0}', space=vmem, size = 0x30000, scoped, tag = 'input window, operand 2, single buffered']
    #allocation8 [shape = 'u8[1536]{0}', space=vmem, size = 0x800, scoped, tag = 'input window, operand 3, single buffered']
    #allocation9 [shape = 's32[1]{0}', space=sflag, size = 0x4, scoped, tag = 'scoped memory for tpu_custom_call.1']
    #allocation10 [shape = 'u8[8192]{0}', space=vmem, size = 0x2000, scoped, tag = 'output window, operand 0, single buffered']
    %9 = vsyncpa [#allocation3], 0
    %10 = vsyncpa [#allocation6], 0
    %11 = vsyncpa [#allocation9], 0
    %12 = vsyncpa [#allocation4], 0
    // Predicated region
    $region2: #{tpu_custom_call.1} parent=1 // pred_check
      _
    $region3: #{tpu_custom_call.1} parent=1 // pred_check_branch
      %14 = sbr.rel (0) target = $region5
    $region4: #{tpu_custom_call.1} parent=1 // pred_region
      %16 = vsyncadd [#allocation3], 0
      %s17 = sshll.u32 %s0, 4
      %s18 = int_to_ptr.hbm [resolvable:$true] %s17
      %s19 = sshll.u32 [#allocation2], 4
      %s20 = int_to_ptr.vmem [resolvable:$true] %s19
      %25 = dma.hbm_to_vmem [thread:$0]  %s18, 128, %s20, [#allocation3], 64, 64, 4
    $region5: #{tpu_custom_call.1} parent=1 // pred_fallthru
      _
    // Predicated region
    $region6: #{tpu_custom_call.1} parent=1 // pred_check
      _
    $region7: #{tpu_custom_call.1} parent=1 // pred_check_branch
      %27 = sbr.rel (0) target = $region9
    $region8: #{tpu_custom_call.1} parent=1 // pred_region
      %29 = vsyncadd [#allocation6], 0
      %s30 = sshll.u32 %s1, 4
      %s31 = int_to_ptr.hbm [resolvable:$true] %s30
      %s32 = sshll.u32 [#allocation5], 4
      %s33 = int_to_ptr.vmem [resolvable:$true] %s32
      %38 = dma.hbm_to_vmem [thread:$0]  %s31, 128, %s33, [#allocation6], 64, 64, 4
    $region9: #{tpu_custom_call.1} parent=1 // pred_fallthru
      _
    // Predicated region
    $region10: #{tpu_custom_call.1} parent=1 // pred_check
      _
    $region11: #{tpu_custom_call.1} parent=1 // pred_check_branch
      %40 = sbr.rel (0) target = $region13
    $region12: #{tpu_custom_call.1} parent=1 // pred_region
      %42 = vsyncadd [#allocation6], 0
      %s43 = sshll.u32 %s2, 4
      %s44 = int_to_ptr.hbm [resolvable:$true] %s43
      %s45 = sshll.u32 [#allocation7], 4
      %s46 = int_to_ptr.vmem [resolvable:$true] %s45
      %51 = dma.hbm_to_vmem [thread:$0]  %s44, 6144, %s46, [#allocation6], 64, 64, 4
    $region13: #{tpu_custom_call.1} parent=1 // pred_fallthru
      _
    // Predicated region
    $region14: #{tpu_custom_call.1} parent=1 // pred_check
      _
    $region15: #{tpu_custom_call.1} parent=1 // pred_check_branch
      %53 = sbr.rel (0) target = $region17
    $region16: #{tpu_custom_call.1} parent=1 // pred_region
      %55 = vsyncadd [#allocation9], 0
      %s56 = sshll.u32 %s3, 4
      %s57 = int_to_ptr.hbm [resolvable:$true] %s56
      %s58 = sshll.u32 [#allocation8], 4
      %s59 = int_to_ptr.vmem [resolvable:$true] %s58
      %64 = dma.hbm_to_vmem [thread:$0]  %s57, 48, %s59, [#allocation9], 16, 16, 1
    $region17: #{tpu_custom_call.1} parent=1 // pred_fallthru
      _
    // Predicated region
    $region18: #{tpu_custom_call.1} parent=1 // pred_check
      _
    $region19: #{tpu_custom_call.1} parent=1 // pred_check_branch
      %66 = sbr.rel (0) target = $region21
    $region20: #{tpu_custom_call.1} parent=1 // pred_region
      %68 = dma.done [#allocation3], 128
    $region21: #{tpu_custom_call.1} parent=1 // pred_fallthru
      _
    // Predicated region
    $region22: #{tpu_custom_call.1} parent=1 // pred_check
      _
    $region23: #{tpu_custom_call.1} parent=1 // pred_check_branch
      %70 = sbr.rel (0) target = $region25
    $region24: #{tpu_custom_call.1} parent=1 // pred_region
      %72 = dma.done [#allocation6], 128
    $region25: #{tpu_custom_call.1} parent=1 // pred_fallthru
      _
    // Predicated region
    $region26: #{tpu_custom_call.1} parent=1 // pred_check
      _
    $region27: #{tpu_custom_call.1} parent=1 // pred_check_branch
      %74 = sbr.rel (0) target = $region29
    $region28: #{tpu_custom_call.1} parent=1 // pred_region
      %76 = dma.done [#allocation6], 6144
    $region29: #{tpu_custom_call.1} parent=1 // pred_fallthru
      _
    // Predicated region
    $region30: #{tpu_custom_call.1} parent=1 // pred_check
      _
    $region31: #{tpu_custom_call.1} parent=1 // pred_check_branch
      %78 = sbr.rel (0) target = $region33
    $region32: #{tpu_custom_call.1} parent=1 // pred_region
      %80 = dma.done [#allocation9], 48
    $region33: #{tpu_custom_call.1} parent=1 // pred_fallthru
      _
    %v82 = vld [vmem:[#allocation2] sm:$0xf]
    %v83 = vld [vmem:[#allocation2 + $0x4] sm:$0xf]
    %v84 = vld [vmem:[#allocation5] sm:$0xf]
    %v85 = vld [vmem:[#allocation5 + $0x4] sm:$0xf]
    %v88 = vunpack.c.l.b16 %v82
    %v89 = vunpack.c.l.b16 %v83
    %v90 = vpack.c.b16 %v89, %v88
    %v93 = vunpack.c.l.b16 %v84
    %v94 = vunpack.c.l.b16 %v85
    %v95 = vpack.c.b16 %v94, %v93
    %vm97 = vcmask 130048
    %v99 = vsel %vm97, %v90, 0
    %101 = vmatpush.bf16.msra.mxu0 0
    %102 = vmatpush.bf16.msra.mxu0 0
    %103 = vmatpush.bf16.msra.mxu0 0
    %104 = vmatpush.bf16.msra.mxu0 0
    %105 = vmatpush.bf16.msra.mxu0 0
    %106 = vmatpush.bf16.msra.mxu0 0
    %107 = vmatpush.bf16.msra.mxu0 0
    %108 = vmatpush.bf16.msra.mxu0 %v95
    %109 = vmatmul.bf16.gmra.mxu0 %v99
    %v110 = vpop.f32.mrf.mxu0
    %v111 = vadd.f32 0.0, %v110
    %v112 = vpop.f32.mrf.mxu0
    %v113 = vadd.f32 0.0, %v112
    %114 = vdwg.mxu0
    %v115 = vpack.c.bf16 %v111, %v111
    %v116 = vpack.c.bf16 %v113, %v113
    %v119 = vunpack.c.l.b16 %v115
    %v120 = vunpack.c.l.b16 %v116
    %v121 = vpack.c.b16 %v120, %v119
    %v123 = vld [vmem:[#allocation7] sm:$0xf]
    %v124 = vld [vmem:[#allocation7 + $0x4] sm:$0xf]
    %v125 = vld [vmem:[#allocation7 + $0x8] sm:$0xf]
    %v126 = vld [vmem:[#allocation7 + $0xc] sm:$0xf]
    %v127 = vld [vmem:[#allocation7 + $0x10] sm:$0xf]
    %v128 = vld [vmem:[#allocation7 + $0x14] sm:$0xf]
    %v129 = vld [vmem:[#allocation7 + $0x18] sm:$0xf]
    %v130 = vld [vmem:[#allocation7 + $0x1c] sm:$0xf]
    %v131 = vld [vmem:[#allocation7 + $0x20] sm:$0xf]
    %v132 = vld [vmem:[#allocation7 + $0x24] sm:$0xf]
    %v133 = vld [vmem:[#allocation7 + $0x28] sm:$0xf]
    %v134 = vld [vmem:[#allocation7 + $0x2c] sm:$0xf]
    %v135 = vld [vmem:[#allocation7 + $0x30] sm:$0xf]
    %v136 = vld [vmem:[#allocation7 + $0x34] sm:$0xf]
    %v137 = vld [vmem:[#allocation7 + $0x38] sm:$0xf]
    %v138 = vld [vmem:[#allocation7 + $0x3c] sm:$0xf]
    %v139 = vld [vmem:[#allocation7 + $0x40] sm:$0xf]
    %v140 = vld [vmem:[#allocation7 + $0x44] sm:$0xf]
    %v141 = vld [vmem:[#allocation7 + $0x48] sm:$0xf]
    %v142 = vld [vmem:[#allocation7 + $0x4c] sm:$0xf]
    %v143 = vld [vmem:[#allocation7 + $0x50] sm:$0xf]
    %v144 = vld [vmem:[#allocation7 + $0x54] sm:$0xf]
    %v145 = vld [vmem:[#allocation7 + $0x58] sm:$0xf]
    %v146 = vld [vmem:[#allocation7 + $0x5c] sm:$0xf]
    %v147 = vld [vmem:[#allocation7 + $0x60] sm:$0xf]
    %v148 = vld [vmem:[#allocation7 + $0x64] sm:$0xf]
    %v149 = vld [vmem:[#allocation7 + $0x68] sm:$0xf]
    %v150 = vld [vmem:[#allocation7 + $0x6c] sm:$0xf]
    %v151 = vld [vmem:[#allocation7 + $0x70] sm:$0xf]
    %v152 = vld [vmem:[#allocation7 + $0x74] sm:$0xf]
    %v153 = vld [vmem:[#allocation7 + $0x78] sm:$0xf]
    %v154 = vld [vmem:[#allocation7 + $0x7c] sm:$0xf]
    %v155 = vld [vmem:[#allocation8] sm:$0x1]
    %v157 = vperm.slane %v155, 0
    %v191 = vunpack.c.l.b16 %v123
    %v192 = vunpack.c.l.b16 %v124
    %v193 = vunpack.c.l.b16 %v125
    %v194 = vunpack.c.l.b16 %v126
    %v195 = vunpack.c.l.b16 %v127
    %v196 = vunpack.c.l.b16 %v128
    %v197 = vunpack.c.l.b16 %v129
    %v198 = vunpack.c.l.b16 %v130
    %v199 = vunpack.c.l.b16 %v131
    %v200 = vunpack.c.l.b16 %v132
    %v201 = vunpack.c.l.b16 %v133
    %v202 = vunpack.c.l.b16 %v134
    %v203 = vunpack.c.l.b16 %v135
    %v204 = vunpack.c.l.b16 %v136
    %v205 = vunpack.c.l.b16 %v137
    %v206 = vunpack.c.l.b16 %v138
    %v207 = vunpack.c.l.b16 %v139
    %v208 = vunpack.c.l.b16 %v140
    %v209 = vunpack.c.l.b16 %v141
    %v210 = vunpack.c.l.b16 %v142
    %v211 = vunpack.c.l.b16 %v143
    %v212 = vunpack.c.l.b16 %v144
    %v213 = vunpack.c.l.b16 %v145
    %v214 = vunpack.c.l.b16 %v146
    %v215 = vunpack.c.l.b16 %v147
    %v216 = vunpack.c.l.b16 %v148
    %v217 = vunpack.c.l.b16 %v149
    %v218 = vunpack.c.l.b16 %v150
    %v219 = vunpack.c.l.b16 %v151
    %v220 = vunpack.c.l.b16 %v152
    %v221 = vunpack.c.l.b16 %v153
    %v222 = vunpack.c.l.b16 %v154
    %v223 = vpack.c.b16 %v192, %v191
    %v224 = vpack.c.b16 %v194, %v193
    %v225 = vpack.c.b16 %v196, %v195
    %v226 = vpack.c.b16 %v198, %v197
    %v227 = vpack.c.b16 %v200, %v199
    %v228 = vpack.c.b16 %v202, %v201
    %v229 = vpack.c.b16 %v204, %v203
    %v230 = vpack.c.b16 %v206, %v205
    %v231 = vpack.c.b16 %v208, %v207
    %v232 = vpack.c.b16 %v210, %v209
    %v233 = vpack.c.b16 %v212, %v211
    %v234 = vpack.c.b16 %v214, %v213
    %v235 = vpack.c.b16 %v216, %v215
    %v236 = vpack.c.b16 %v218, %v217
    %v237 = vpack.c.b16 %v220, %v219
    %v238 = vpack.c.b16 %v222, %v221
    %255 = vmatpush.bf16.msra.mxu0 %v230
    %256 = vmatpush.bf16.msra.mxu0 %v229
    %257 = vmatpush.bf16.msra.mxu0 %v228
    %258 = vmatpush.bf16.msra.mxu0 %v227
    %259 = vmatpush.bf16.msra.mxu0 %v226
    %260 = vmatpush.bf16.msra.mxu0 %v225
    %261 = vmatpush.bf16.msra.mxu0 %v224
    %262 = vmatpush.bf16.msra.mxu0 %v223
    %263 = vmatmul.bf16.gmra.mxu0 %v95
    %v264 = vpop.f32.mrf.mxu0
    %v265 = vadd.f32 %v157, %v264
    %v266 = vpop.f32.mrf.mxu0
    %v267 = vadd.f32 %v157, %v266
    %268 = vdwg.mxu0
    %269 = vmatpush.bf16.msra.mxu0 %v238
    %270 = vmatpush.bf16.msra.mxu0 %v237
    %271 = vmatpush.bf16.msra.mxu0 %v236
    %272 = vmatpush.bf16.msra.mxu0 %v235
    %273 = vmatpush.bf16.msra.mxu0 %v234
    %274 = vmatpush.bf16.msra.mxu0 %v233
    %275 = vmatpush.bf16.msra.mxu0 %v232
    %276 = vmatpush.bf16.msra.mxu0 %v231
    %277 = vmatmul.bf16.gmra.mxu0 %v121
    %v278 = vpop.f32.mrf.mxu0
    %v279 = vadd.f32 %v265, %v278
    %v280 = vpop.f32.mrf.mxu0
    %v281 = vadd.f32 %v267, %v280
    %282 = vdwg.mxu0
    %v283 = vmax.f32 %v279, 0.0
    %v284 = vmax.f32 %v281, 0.0
    %v285 = vpack.c.bf16 %v283, %v283
    %v286 = vpack.c.bf16 %v284, %v284
    %v289 = vunpack.c.l.b16 %v285
    %v290 = vunpack.c.l.b16 %v286
    %v291 = vpack.c.b16 %v290, %v289
    %293 = vmatpush.bf16.msra.mxu0 0
    %294 = vmatpush.bf16.msra.mxu0 0
    %295 = vmatpush.bf16.msra.mxu0 0
    %296 = vmatpush.bf16.msra.mxu0 0
    %297 = vmatpush.bf16.msra.mxu0 0
    %298 = vmatpush.bf16.msra.mxu0 0
    %299 = vmatpush.bf16.msra.mxu0 0
    %300 = vmatpush.bf16.msra.mxu0 %v291
    %301 = vmatmul.bf16.gmra.mxu0 %v99
    %v302 = vpop.f32.mrf.mxu0
    %v303 = vadd.f32 0.0, %v302
    %v304 = vpop.f32.mrf.mxu0
    %v305 = vadd.f32 0.0, %v304
    %306 = vdwg.mxu0
    %v307 = vpack.c.bf16 %v303, %v303
    %v308 = vpack.c.bf16 %v305, %v305
    %v311 = vunpack.c.l.b16 %v307
    %v312 = vunpack.c.l.b16 %v308
    %v313 = vpack.c.b16 %v312, %v311
    %s315 = scalar_lea.vmem [#allocation7], 128
    %v316 = vld [vmem:[%s315] sm:$0xf]
    %v317 = vld [vmem:[%s315 + $0x4] sm:$0xf]
    %v318 = vld [vmem:[%s315 + $0x8] sm:$0xf]
    %v319 = vld [vmem:[%s315 + $0xc] sm:$0xf]
    %v320 = vld [vmem:[%s315 + $0x10] sm:$0xf]
    %v321 = vld [vmem:[%s315 + $0x14] sm:$0xf]
    %v322 = vld [vmem:[%s315 + $0x18] sm:$0xf]
    %v323 = vld [vmem:[%s315 + $0x1c] sm:$0xf]
    %v324 = vld [vmem:[%s315 + $0x20] sm:$0xf]
    %v325 = vld [vmem:[%s315 + $0x24] sm:$0xf]
    %v326 = vld [vmem:[%s315 + $0x28] sm:$0xf]
    %v327 = vld [vmem:[%s315 + $0x2c] sm:$0xf]
    %v328 = vld [vmem:[%s315 + $0x30] sm:$0xf]
    %v329 = vld [vmem:[%s315 + $0x34] sm:$0xf]
    %v330 = vld [vmem:[%s315 + $0x38] sm:$0xf]
    %v331 = vld [vmem:[%s315 + $0x3c] sm:$0xf]
    %v332 = vld [vmem:[%s315 + $0x40] sm:$0xf]
    %v333 = vld [vmem:[%s315 + $0x44] sm:$0xf]
    %v334 = vld [vmem:[%s315 + $0x48] sm:$0xf]
    %v335 = vld [vmem:[%s315 + $0x4c] sm:$0xf]
    %v336 = vld [vmem:[%s315 + $0x50] sm:$0xf]
    %v337 = vld [vmem:[%s315 + $0x54] sm:$0xf]
    %v338 = vld [vmem:[%s315 + $0x58] sm:$0xf]
    %v339 = vld [vmem:[%s315 + $0x5c] sm:$0xf]
    %v340 = vld [vmem:[%s315 + $0x60] sm:$0xf]
    %v341 = vld [vmem:[%s315 + $0x64] sm:$0xf]
    %v342 = vld [vmem:[%s315 + $0x68] sm:$0xf]
    %v343 = vld [vmem:[%s315 + $0x6c] sm:$0xf]
    %v344 = vld [vmem:[%s315 + $0x70] sm:$0xf]
    %v345 = vld [vmem:[%s315 + $0x74] sm:$0xf]
    %v346 = vld [vmem:[%s315 + $0x78] sm:$0xf]
    %v347 = vld [vmem:[%s315 + $0x7c] sm:$0xf]
    %s348 = scalar_lea.vmem [#allocation8], 1
    %v349 = vld [vmem:[%s348] sm:$0x1]
    %v351 = vperm.slane %v349, 0
    %v385 = vunpack.c.l.b16 %v316
    %v386 = vunpack.c.l.b16 %v317
    %v387 = vunpack.c.l.b16 %v318
    %v388 = vunpack.c.l.b16 %v319
    %v389 = vunpack.c.l.b16 %v320
    %v390 = vunpack.c.l.b16 %v321
    %v391 = vunpack.c.l.b16 %v322
    %v392 = vunpack.c.l.b16 %v323
    %v393 = vunpack.c.l.b16 %v324
    %v394 = vunpack.c.l.b16 %v325
    %v395 = vunpack.c.l.b16 %v326
    %v396 = vunpack.c.l.b16 %v327
    %v397 = vunpack.c.l.b16 %v328
    %v398 = vunpack.c.l.b16 %v329
    %v399 = vunpack.c.l.b16 %v330
    %v400 = vunpack.c.l.b16 %v331
    %v401 = vunpack.c.l.b16 %v332
    %v402 = vunpack.c.l.b16 %v333
    %v403 = vunpack.c.l.b16 %v334
    %v404 = vunpack.c.l.b16 %v335
    %v405 = vunpack.c.l.b16 %v336
    %v406 = vunpack.c.l.b16 %v337
    %v407 = vunpack.c.l.b16 %v338
    %v408 = vunpack.c.l.b16 %v339
    %v409 = vunpack.c.l.b16 %v340
    %v410 = vunpack.c.l.b16 %v341
    %v411 = vunpack.c.l.b16 %v342
    %v412 = vunpack.c.l.b16 %v343
    %v413 = vunpack.c.l.b16 %v344
    %v414 = vunpack.c.l.b16 %v345
    %v415 = vunpack.c.l.b16 %v346
    %v416 = vunpack.c.l.b16 %v347
    %v417 = vpack.c.b16 %v386, %v385
    %v418 = vpack.c.b16 %v388, %v387
    %v419 = vpack.c.b16 %v390, %v389
    %v420 = vpack.c.b16 %v392, %v391
    %v421 = vpack.c.b16 %v394, %v393
    %v422 = vpack.c.b16 %v396, %v395
    %v423 = vpack.c.b16 %v398, %v397
    %v424 = vpack.c.b16 %v400, %v399
    %v425 = vpack.c.b16 %v402, %v401
    %v426 = vpack.c.b16 %v404, %v403
    %v427 = vpack.c.b16 %v406, %v405
    %v428 = vpack.c.b16 %v408, %v407
    %v429 = vpack.c.b16 %v410, %v409
    %v430 = vpack.c.b16 %v412, %v411
    %v431 = vpack.c.b16 %v414, %v413
    %v432 = vpack.c.b16 %v416, %v415
    %449 = vmatpush.bf16.msra.mxu0 %v424
    %450 = vmatpush.bf16.msra.mxu0 %v423
    %451 = vmatpush.bf16.msra.mxu0 %v422
    %452 = vmatpush.bf16.msra.mxu0 %v421
    %453 = vmatpush.bf16.msra.mxu0 %v420
    %454 = vmatpush.bf16.msra.mxu0 %v419
    %455 = vmatpush.bf16.msra.mxu0 %v418
    %456 = vmatpush.bf16.msra.mxu0 %v417
    %457 = vmatmul.bf16.gmra.mxu0 %v291
    %v458 = vpop.f32.mrf.mxu0
    %v459 = vadd.f32 %v351, %v458
    %v460 = vpop.f32.mrf.mxu0
    %v461 = vadd.f32 %v351, %v460
    %462 = vdwg.mxu0
    %463 = vmatpush.bf16.msra.mxu0 %v432
    %464 = vmatpush.bf16.msra.mxu0 %v431
    %465 = vmatpush.bf16.msra.mxu0 %v430
    %466 = vmatpush.bf16.msra.mxu0 %v429
    %467 = vmatpush.bf16.msra.mxu0 %v428
    %468 = vmatpush.bf16.msra.mxu0 %v427
    %469 = vmatpush.bf16.msra.mxu0 %v426
    %470 = vmatpush.bf16.msra.mxu0 %v425
    %471 = vmatmul.bf16.gmra.mxu0 %v313
    %v472 = vpop.f32.mrf.mxu0
    %v473 = vadd.f32 %v459, %v472
    %v474 = vpop.f32.mrf.mxu0
    %v475 = vadd.f32 %v461, %v474
    %476 = vdwg.mxu0
    %v477 = vmax.f32 %v473, 0.0
    %v478 = vmax.f32 %v475, 0.0
    %v479 = vpack.c.bf16 %v477, %v477
    %v480 = vpack.c.bf16 %v478, %v478
    %v483 = vunpack.c.l.b16 %v479
    %v484 = vunpack.c.l.b16 %v480
    %v485 = vpack.c.b16 %v484, %v483
    %487 = vmatpush.bf16.msra.mxu0 0
    %488 = vmatpush.bf16.msra.mxu0 0
    %489 = vmatpush.bf16.msra.mxu0 0
    %490 = vmatpush.bf16.msra.mxu0 0
    %491 = vmatpush.bf16.msra.mxu0 0
    %492 = vmatpush.bf16.msra.mxu0 0
    %493 = vmatpush.bf16.msra.mxu0 0
    %494 = vmatpush.bf16.msra.mxu0 %v485
    %495 = vmatmul.bf16.gmra.mxu0 %v99
    %v496 = vpop.f32.mrf.mxu0
    %v497 = vadd.f32 0.0, %v496
    %v498 = vpop.f32.mrf.mxu0
    %v499 = vadd.f32 0.0, %v498
    %500 = vdwg.mxu0
    %v501 = vpack.c.bf16 %v497, %v497
    %v502 = vpack.c.bf16 %v499, %v499
    %v505 = vunpack.c.l.b16 %v501
    %v506 = vunpack.c.l.b16 %v502
    %v507 = vpack.c.b16 %v506, %v505
    %s509 = scalar_lea.vmem [#allocation7], 256
    %v510 = vld [vmem:[%s509] sm:$0xf]
    %v511 = vld [vmem:[%s509 + $0x4] sm:$0xf]
    %v512 = vld [vmem:[%s509 + $0x8] sm:$0xf]
    %v513 = vld [vmem:[%s509 + $0xc] sm:$0xf]
    %v514 = vld [vmem:[%s509 + $0x10] sm:$0xf]
    %v515 = vld [vmem:[%s509 + $0x14] sm:$0xf]
    %v516 = vld [vmem:[%s509 + $0x18] sm:$0xf]
    %v517 = vld [vmem:[%s509 + $0x1c] sm:$0xf]
    %v518 = vld [vmem:[%s509 + $0x20] sm:$0xf]
    %v519 = vld [vmem:[%s509 + $0x24] sm:$0xf]
    %v520 = vld [vmem:[%s509 + $0x28] sm:$0xf]
    %v521 = vld [vmem:[%s509 + $0x2c] sm:$0xf]
    %v522 = vld [vmem:[%s509 + $0x30] sm:$0xf]
    %v523 = vld [vmem:[%s509 + $0x34] sm:$0xf]
    %v524 = vld [vmem:[%s509 + $0x38] sm:$0xf]
    %v525 = vld [vmem:[%s509 + $0x3c] sm:$0xf]
    %v526 = vld [vmem:[%s509 + $0x40] sm:$0xf]
    %v527 = vld [vmem:[%s509 + $0x44] sm:$0xf]
    %v528 = vld [vmem:[%s509 + $0x48] sm:$0xf]
    %v529 = vld [vmem:[%s509 + $0x4c] sm:$0xf]
    %v530 = vld [vmem:[%s509 + $0x50] sm:$0xf]
    %v531 = vld [vmem:[%s509 + $0x54] sm:$0xf]
    %v532 = vld [vmem:[%s509 + $0x58] sm:$0xf]
    %v533 = vld [vmem:[%s509 + $0x5c] sm:$0xf]
    %v534 = vld [vmem:[%s509 + $0x60] sm:$0xf]
    %v535 = vld [vmem:[%s509 + $0x64] sm:$0xf]
    %v536 = vld [vmem:[%s509 + $0x68] sm:$0xf]
    %v537 = vld [vmem:[%s509 + $0x6c] sm:$0xf]
    %v538 = vld [vmem:[%s509 + $0x70] sm:$0xf]
    %v539 = vld [vmem:[%s509 + $0x74] sm:$0xf]
    %v540 = vld [vmem:[%s509 + $0x78] sm:$0xf]
    %v541 = vld [vmem:[%s509 + $0x7c] sm:$0xf]
    %s542 = scalar_lea.vmem [#allocation8], 2
    %v543 = vld [vmem:[%s542] sm:$0x1]
    %v545 = vperm.slane %v543, 0
    %v579 = vunpack.c.l.b16 %v510
    %v580 = vunpack.c.l.b16 %v511
    %v581 = vunpack.c.l.b16 %v512
    %v582 = vunpack.c.l.b16 %v513
    %v583 = vunpack.c.l.b16 %v514
    %v584 = vunpack.c.l.b16 %v515
    %v585 = vunpack.c.l.b16 %v516
    %v586 = vunpack.c.l.b16 %v517
    %v587 = vunpack.c.l.b16 %v518
    %v588 = vunpack.c.l.b16 %v519
    %v589 = vunpack.c.l.b16 %v520
    %v590 = vunpack.c.l.b16 %v521
    %v591 = vunpack.c.l.b16 %v522
    %v592 = vunpack.c.l.b16 %v523
    %v593 = vunpack.c.l.b16 %v524
    %v594 = vunpack.c.l.b16 %v525
    %v595 = vunpack.c.l.b16 %v526
    %v596 = vunpack.c.l.b16 %v527
    %v597 = vunpack.c.l.b16 %v528
    %v598 = vunpack.c.l.b16 %v529
    %v599 = vunpack.c.l.b16 %v530
    %v600 = vunpack.c.l.b16 %v531
    %v601 = vunpack.c.l.b16 %v532
    %v602 = vunpack.c.l.b16 %v533
    %v603 = vunpack.c.l.b16 %v534
    %v604 = vunpack.c.l.b16 %v535
    %v605 = vunpack.c.l.b16 %v536
    %v606 = vunpack.c.l.b16 %v537
    %v607 = vunpack.c.l.b16 %v538
    %v608 = vunpack.c.l.b16 %v539
    %v609 = vunpack.c.l.b16 %v540
    %v610 = vunpack.c.l.b16 %v541
    %v611 = vpack.c.b16 %v580, %v579
    %v612 = vpack.c.b16 %v582, %v581
    %v613 = vpack.c.b16 %v584, %v583
    %v614 = vpack.c.b16 %v586, %v585
    %v615 = vpack.c.b16 %v588, %v587
    %v616 = vpack.c.b16 %v590, %v589
    %v617 = vpack.c.b16 %v592, %v591
    %v618 = vpack.c.b16 %v594, %v593
    %v619 = vpack.c.b16 %v596, %v595
    %v620 = vpack.c.b16 %v598, %v597
    %v621 = vpack.c.b16 %v600, %v599
    %v622 = vpack.c.b16 %v602, %v601
    %v623 = vpack.c.b16 %v604, %v603
    %v624 = vpack.c.b16 %v606, %v605
    %v625 = vpack.c.b16 %v608, %v607
    %v626 = vpack.c.b16 %v610, %v609
    %643 = vmatpush.bf16.msra.mxu0 %v618
    %644 = vmatpush.bf16.msra.mxu0 %v617
    %645 = vmatpush.bf16.msra.mxu0 %v616
    %646 = vmatpush.bf16.msra.mxu0 %v615
    %647 = vmatpush.bf16.msra.mxu0 %v614
    %648 = vmatpush.bf16.msra.mxu0 %v613
    %649 = vmatpush.bf16.msra.mxu0 %v612
    %650 = vmatpush.bf16.msra.mxu0 %v611
    %651 = vmatmul.bf16.gmra.mxu0 %v485
    %v652 = vpop.f32.mrf.mxu0
    %v653 = vadd.f32 %v545, %v652
    %v654 = vpop.f32.mrf.mxu0
    %v655 = vadd.f32 %v545, %v654
    %656 = vdwg.mxu0
    %657 = vmatpush.bf16.msra.mxu0 %v626
    %658 = vmatpush.bf16.msra.mxu0 %v625
    %659 = vmatpush.bf16.msra.mxu0 %v624
    %660 = vmatpush.bf16.msra.mxu0 %v623
    %661 = vmatpush.bf16.msra.mxu0 %v622
    %662 = vmatpush.bf16.msra.mxu0 %v621
    %663 = vmatpush.bf16.msra.mxu0 %v620
    %664 = vmatpush.bf16.msra.mxu0 %v619
    %665 = vmatmul.bf16.gmra.mxu0 %v507
    %v666 = vpop.f32.mrf.mxu0
    %v667 = vadd.f32 %v653, %v666
    %v668 = vpop.f32.mrf.mxu0
    %v669 = vadd.f32 %v655, %v668
    %670 = vdwg.mxu0
    %671 = vst [vmem:[#allocation10] sm:$0xff] %v667
    %672 = vst [vmem:[#allocation10 + $0x8] sm:$0xff] %v669
    // Predicated region
    $region34: #{tpu_custom_call.1} parent=1 // pred_check
      _
    $region35: #{tpu_custom_call.1} parent=1 // pred_check_branch
      %674 = sbr.rel (0) target = $region37
    $region36: #{tpu_custom_call.1} parent=1 // pred_region
      %676 = vsyncadd [#allocation4], 0
      %s677 = sshll.u32 [#allocation10], 4
      %s678 = int_to_ptr.vmem [resolvable:$true] %s677
      %s679 = sshll.u32 %s4, 4
      %s680 = int_to_ptr.hbm [resolvable:$true] %s679
      %685 = dma.vmem_to_hbm [thread:$0]  %s678, 256, %s680, [#allocation4], 128, 128, 8
    $region37: #{tpu_custom_call.1} parent=1 // pred_fallthru
      _
    // Predicated region
    $region38: #{tpu_custom_call.1} parent=1 // pred_check
      _
    $region39: #{tpu_custom_call.1} parent=1 // pred_check_branch
      %687 = sbr.rel (0) target = $region41
    $region40: #{tpu_custom_call.1} parent=1 // pred_region
      %689 = dma.done [#allocation4], 256
    $region41: #{tpu_custom_call.1} parent=1 // pred_fallthru
      _
    %690 = vsyncpa [#allocation3], 1
    %691 = vsyncpa [#allocation6], 1
    %692 = vsyncpa [#allocation9], 1
    %693 = vsyncpa [#allocation4], 1

</llo_original>
